<compile_context>
chip_gen: v7x
topology: tpu7x:2x2x1
jax: 0.10.0
libtpu: 0.0.40
codegen_flags: <defaults>
</compile_context>

<pallas_src>
import jax
import jax.numpy as jnp
from jax.experimental import pallas as pl
from jax.experimental.pallas import tpu as pltpu

BN_EPS = 1e-5
_DEFAULT_TILE_CAP = 2048   # sweep 1024/2048/4096/8192 on real hardware; VMEM use is tiny


def _round_up(n, m):
    return ((n + m - 1) // m) * m


def _ffnn_kernel(x_ref, w1_ref, b1_ref, w2_ref, b2_ref, w3_ref, b3_ref, o_ref):
    """One batch tile: fc1(+bn1)+relu -> fc2(+bn2)+relu -> fc3, lane-dense output row."""
    # In-kernel cast of x to the MXU dtype (hidden under the tile DMA; no wrapper pass).
    x = x_ref[...].astype(w1_ref.dtype)

    # ---- layer 1: fc1 (+ folded bn1) + relu (dropout == identity in eval) ----
    h1 = jnp.dot(x, w1_ref[...], preferred_element_type=jnp.float32)
    h1 = jnp.maximum(h1 + b1_ref[...], 0.0)            # bias/ReLU in f32 (v5e-safe)

    # ---- layer 2: fc2 (+ folded bn2) + relu ----
    h2 = jnp.dot(h1.astype(w2_ref.dtype), w2_ref[...],
                 preferred_element_type=jnp.float32)
    h2 = jnp.maximum(h2 + b2_ref[...], 0.0)

    # ---- layer 3: fc3 (out_features == 1), produced lane-dense as a (1, tile_b) row ----
    # (1, H2) x (tile_b, H2)^T contraction -> batch lands on the lane axis, so the output
    # store is a full-width vector store instead of tile_b masked 1-lane stores.
    out_row = jax.lax.dot_general(
        w3_ref[...], h2,
        dimension_numbers=(((1,), (1,)), ((), ())),     # rhs-transposed (flash-attn style)
        preferred_element_type=jnp.float32)             # (1, tile_b)
    o_ref[0] = (out_row + b3_ref[0, 0]).astype(o_ref.dtype)


def fold_batchnorm(w, b, gamma, beta, mean, var, eps=BN_EPS):
    """Fold eval-mode BatchNorm1d into the preceding Linear. w: [in, out]; rest: (1, out)."""
    scale = gamma * jax.lax.rsqrt(var + eps)
    return w * scale, (b - mean) * scale + beta


def feedforward_nn(x, params, *, tile_b=None, mxu_dtype=jnp.bfloat16):
    """x: [B, D] float32.  Returns [B] float32 (matches FeedforwardNN.forward in eval)."""
    B, D = x.shape
    H1 = params["w1"].shape[1]
    H2 = params["w2"].shape[1]

    # --- fold eval-mode BatchNorm into the Linear layers (offline, in f32) ---
    w1f, b1f = fold_batchnorm(params["w1"], params["b1"], params["g1"],
                              params["beta1"], params["mean1"], params["var1"])
    w2f, b2f = fold_batchnorm(params["w2"], params["b2"], params["g2"],
                              params["beta2"], params["mean2"], params["var2"])
    w3_row = params["w3"].reshape(1, H2).astype(jnp.float32)   # fc3 weight as a row (f32)
    b3 = params["b3"].reshape(1, 1).astype(jnp.float32)        # scalar, lives in SMEM

    # Weights for the two MXU matmuls in mxu_dtype; biases / fc3 stay f32 (VPU math in f32).
    w1f = w1f.astype(mxu_dtype)
    w2f = w2f.astype(mxu_dtype)
    b1f = b1f.astype(jnp.float32)
    b2f = b2f.astype(jnp.float32)

    # --- batch tiling: big tiles (per-step overhead dominated), multiple of 8, and
    # roughly <= B/2 so a v7x chip gets >= 2 grid steps to shard across its 2 TCs. ---
    if tile_b is None:
        tile_b = min(_DEFAULT_TILE_CAP, _round_up(max((B + 1) // 2, 8), 8))
    tile_b = max(8, _round_up(tile_b, 8))
    num_tiles = pl.cdiv(B, tile_b)   # ragged last tile handled by Pallas (no jnp.pad pass)

    # advisory cost hint for the XLA scheduler around the custom call
    flops = 2 * B * (D * H1 + H1 * H2 + H2)
    bytes_accessed = int(
        x.size * x.dtype.itemsize
        + w1f.size * w1f.dtype.itemsize
        + w2f.size * w2f.dtype.itemsize
        + (b1f.size + b2f.size + w3_row.size + b3.size) * 4
        + num_tiles * tile_b * 4
    )
    cost = pl.CostEstimate(flops=flops, transcendentals=0,
                           bytes_accessed=bytes_accessed)

    out = pl.pallas_call(
        _ffnn_kernel,
        # Lane-dense output: batch on the lane axis, one (1, tile_b) row per grid step.
        out_shape=jax.ShapeDtypeStruct((num_tiles, 1, tile_b), jnp.float32),
        grid=(num_tiles,),
        in_specs=[
            pl.BlockSpec((tile_b, D), lambda i: (i, 0)),   # x: tiled over batch (f32, cast in-kernel)
            pl.BlockSpec((D, H1), lambda i: (0, 0)),       # weights stay resident
            pl.BlockSpec((1, H1), lambda i: (0, 0)),
            pl.BlockSpec((H1, H2), lambda i: (0, 0)),
            pl.BlockSpec((1, H2), lambda i: (0, 0)),
            pl.BlockSpec((1, H2), lambda i: (0, 0)),
            pl.BlockSpec(memory_space=pltpu.SMEM),         # b3 scalar in SMEM
        ],
        out_specs=pl.BlockSpec((1, 1, tile_b), lambda i: (i, 0, 0)),
        compiler_params=pltpu.CompilerParams(
            dimension_semantics=("parallel",),             # shard batch over v7x's 2 TCs
            vmem_limit_bytes=32 * 1024 * 1024,             # >> actual use; safe on v5e-v7x
        ),
        cost_estimate=cost,
    )(x, w1f, b1f, w2f, b2f, w3_row, b3)

    # (num_tiles, 1, tile_b) -> flat, drop the ragged tail garbage rows.
    return out.reshape(-1)[:B]


def init_params(key, input_size, hidden_sizes=(32, 16)):
    h1, h2 = hidden_sizes
    ks = jax.random.split(key, 14)
    f32 = jnp.float32
    params = {
        # Linear weights stored as [in, out] (transpose of PyTorch's [out, in]).
        "w1": jax.random.normal(ks[0], (input_size, h1), f32) * 0.1,
        "b1": jax.random.normal(ks[1], (1, h1), f32) * 0.1,
        "g1": 1.0 + 0.1 * jax.random.normal(ks[2], (1, h1), f32),
        "beta1": 0.1 * jax.random.normal(ks[3], (1, h1), f32),
        "mean1": 0.1 * jax.random.normal(ks[4], (1, h1), f32),
        "var1": 0.5 + jax.random.uniform(ks[5], (1, h1), f32),   # > 0
        "w2": jax.random.normal(ks[6], (h1, h2), f32) * 0.1,
        "b2": jax.random.normal(ks[7], (1, h2), f32) * 0.1,
        "g2": 1.0 + 0.1 * jax.random.normal(ks[8], (1, h2), f32),
        "beta2": 0.1 * jax.random.normal(ks[9], (1, h2), f32),
        "mean2": 0.1 * jax.random.normal(ks[10], (1, h2), f32),
        "var2": 0.5 + jax.random.uniform(ks[11], (1, h2), f32),  # > 0
        "w3": jax.random.normal(ks[12], (h2, 1), f32) * 0.1,
        "b3": jax.random.normal(ks[13], (1, 1), f32) * 0.1,
    }
    return params


def reference_forward(x, p):
    """Pure-JAX reference (eval-mode PyTorch semantics)."""
    h = x @ p["w1"] + p["b1"]
    h = (h - p["mean1"]) / jnp.sqrt(p["var1"] + BN_EPS) * p["g1"] + p["beta1"]
    h = jnp.maximum(h, 0.0)
    h = h @ p["w2"] + p["b2"]
    h = (h - p["mean2"]) / jnp.sqrt(p["var2"] + BN_EPS) * p["g2"] + p["beta2"]
    h = jnp.maximum(h, 0.0)
    h = h @ p["w3"] + p["b3"]
    return h[:, 0]


if __name__ == "__main__":
    key = jax.random.PRNGKey(0)
    k_x, k_p = jax.random.split(key)

    B, D = 8, 16   # batch=8, input_size=16, hidden_sizes=[32, 16]
    x = jax.random.normal(k_x, (B, D), jnp.float32)
    params = init_params(k_p, D, (32, 16))
    y_ref = reference_forward(x, params)

    # Exact-semantics check: f32 MXU path vs the un-folded reference.
    y_f32 = jax.block_until_ready(feedforward_nn(x, params, mxu_dtype=jnp.float32))
    assert y_f32.shape == (B,)
    assert jnp.allclose(y_f32, y_ref, atol=1e-4, rtol=1e-4), (y_f32, y_ref)

    # Production path: bf16 MXU operands, f32 accumulation.
    y_bf16 = jax.block_until_ready(feedforward_nn(x, params))
    assert y_bf16.shape == (B,)
    assert jnp.allclose(y_bf16, y_ref, atol=5e-2, rtol=5e-2), (y_bf16, y_ref)

    # Exercise grid > 1 and the ragged (non-divisible) last tile, f32 exact path.
    B2 = 300
    x2 = jax.random.normal(k_x, (B2, D), jnp.float32)
    y2 = jax.block_until_ready(
        feedforward_nn(x2, params, tile_b=128, mxu_dtype=jnp.float32))
    assert y2.shape == (B2,)
    assert jnp.allclose(y2, reference_forward(x2, params), atol=1e-4, rtol=1e-4)

    # Production defaults at a larger batch: tile_b=2048, grid=3, ragged tail, bf16 MXU.
    B3 = 4100
    x3 = jax.random.normal(jax.random.PRNGKey(1), (B3, D), jnp.float32)
    y3 = jax.block_until_ready(feedforward_nn(x3, params))
    assert y3.shape == (B3,)
    assert jnp.allclose(y3, reference_forward(x3, params), atol=5e-2, rtol=5e-2)

    print("KERNEL_OK")
</pallas_src>

<mosaic_0001>
module attributes {stable_mosaic.version = 11 : i64} {
  func.func @_ffnn_kernel(%arg0: i32, %arg1: memref<8x16xf32, #tpu.memory_space<vmem>>, %arg2: memref<16x32xf32, #tpu.memory_space<vmem>>, %arg3: memref<1x32xf32, #tpu.memory_space<vmem>>, %arg4: memref<32x16xf32, #tpu.memory_space<vmem>>, %arg5: memref<1x16xf32, #tpu.memory_space<vmem>>, %arg6: memref<1x16xf32, #tpu.memory_space<vmem>>, %arg7: memref<1x1xf32, #tpu.memory_space<smem>>, %arg8: memref<1x1x8xf32, #tpu.memory_space<vmem>>) attributes {dimension_semantics = [#tpu.dimension_semantics<parallel>], iteration_bounds = array<i64: 1>, scalar_prefetch = 0 : i64, scratch_operands = 0 : i64, tpu.core_type = #tpu.core_type<tc>, window_params = [{transform_indices = @transform_0, window_bounds = array<i64: 8, 16>}, {pipeline_mode = #tpu.pipeline_mode<synchronous>, transform_indices = @transform_1, window_bounds = array<i64: 16, 32>}, {pipeline_mode = #tpu.pipeline_mode<synchronous>, transform_indices = @transform_2, window_bounds = array<i64: 1, 32>}, {pipeline_mode = #tpu.pipeline_mode<synchronous>, transform_indices = @transform_3, window_bounds = array<i64: 32, 16>}, {pipeline_mode = #tpu.pipeline_mode<synchronous>, transform_indices = @transform_4, window_bounds = array<i64: 1, 16>}, {pipeline_mode = #tpu.pipeline_mode<synchronous>, transform_indices = @transform_5, window_bounds = array<i64: 1, 16>}, {transform_indices = @transform_6, window_bounds = array<i64: 1, 1>}, {transform_indices = @transform_7, window_bounds = array<i64: 1, 1, 8>}]} {
    %c0 = arith.constant 0 : index
    %c0_0 = arith.constant 0 : index
    %0 = vector.load %arg1[%c0, %c0_0] : memref<8x16xf32, #tpu.memory_space<vmem>>, vector<8x16xf32>
    %c0_1 = arith.constant 0 : index
    %c0_2 = arith.constant 0 : index
    %1 = vector.load %arg2[%c0_1, %c0_2] : memref<16x32xf32, #tpu.memory_space<vmem>>, vector<16x32xf32>
    %cst = arith.constant dense<0.000000e+00> : vector<8x32xf32>
    %2 = tpu.matmul %0, %1, %cst {dimension_numbers = #tpu.dot_dimension_numbers<[1], [0], [0], [1], [0, 0, 1, 1], [], []>} : vector<8x16xf32>, vector<16x32xf32>, vector<8x32xf32> -> vector<8x32xf32>
    %c0_3 = arith.constant 0 : index
    %c0_4 = arith.constant 0 : index
    %3 = vector.load %arg3[%c0_3, %c0_4] : memref<1x32xf32, #tpu.memory_space<vmem>>, vector<1x32xf32>
    %4 = vector.broadcast %3 : vector<1x32xf32> to vector<8x32xf32>
    %5 = arith.addf %2, %4 : vector<8x32xf32>
    %cst_5 = arith.constant 0.000000e+00 : f32
    %6 = vector.broadcast %cst_5 : f32 to vector<8x32xf32>
    %7 = arith.maximumf %5, %6 : vector<8x32xf32>
    %c0_6 = arith.constant 0 : index
    %c0_7 = arith.constant 0 : index
    %8 = vector.load %arg4[%c0_6, %c0_7] : memref<32x16xf32, #tpu.memory_space<vmem>>, vector<32x16xf32>
    %cst_8 = arith.constant dense<0.000000e+00> : vector<8x16xf32>
    %9 = tpu.matmul %7, %8, %cst_8 {dimension_numbers = #tpu.dot_dimension_numbers<[1], [0], [0], [1], [0, 0, 1, 1], [], []>} : vector<8x32xf32>, vector<32x16xf32>, vector<8x16xf32> -> vector<8x16xf32>
    %c0_9 = arith.constant 0 : index
    %c0_10 = arith.constant 0 : index
    %10 = vector.load %arg5[%c0_9, %c0_10] : memref<1x16xf32, #tpu.memory_space<vmem>>, vector<1x16xf32>
    %11 = vector.broadcast %10 : vector<1x16xf32> to vector<8x16xf32>
    %12 = arith.addf %9, %11 : vector<8x16xf32>
    %cst_11 = arith.constant 0.000000e+00 : f32
    %13 = vector.broadcast %cst_11 : f32 to vector<8x16xf32>
    %14 = arith.maximumf %12, %13 : vector<8x16xf32>
    %c0_12 = arith.constant 0 : index
    %c0_13 = arith.constant 0 : index
    %15 = vector.load %arg6[%c0_12, %c0_13] : memref<1x16xf32, #tpu.memory_space<vmem>>, vector<1x16xf32>
    %cst_14 = arith.constant dense<0.000000e+00> : vector<1x8xf32>
    %16 = tpu.matmul %15, %14, %cst_14 {dimension_numbers = #tpu.dot_dimension_numbers<[1], [1], [0], [0], [0, 0, 1, 0], [], []>} : vector<1x16xf32>, vector<8x16xf32>, vector<1x8xf32> -> vector<1x8xf32>
    %c0_15 = arith.constant 0 : index
    %c0_16 = arith.constant 0 : index
    %17 = memref.load %arg7[%c0_15, %c0_16] : memref<1x1xf32, #tpu.memory_space<smem>>
    %18 = vector.broadcast %17 : f32 to vector<1x8xf32>
    %19 = arith.addf %16, %18 : vector<1x8xf32>
    %c0_17 = arith.constant 0 : index
    %c0_18 = arith.constant 0 : index
    %c0_19 = arith.constant 0 : index
    %20 = vector.load %arg8[%c0_17, %c0_18, %c0_19] : memref<1x1x8xf32, #tpu.memory_space<vmem>>, vector<1x1x8xf32>
    %21 = vector.shape_cast %20 : vector<1x1x8xf32> to vector<1x8xf32>
    %22 = vector.shape_cast %19 : vector<1x8xf32> to vector<1x1x8xf32>
    tpu.vector_store %arg8[%c0_17, %c0_18, %c0_19], %22 {strides = array<i32>} : memref<1x1x8xf32, #tpu.memory_space<vmem>>, vector<1x1x8xf32>,
    return
  }
  func.func @transform_0(%arg0: i32) -> (i32, i32) {
    %c0_i32 = arith.constant 0 : i32
    %c0_i32_0 = arith.constant 0 : i32
    return %arg0, %c0_i32 : i32, i32
  }
  func.func @transform_1(%arg0: i32) -> (i32, i32) {
    %c0_i32 = arith.constant 0 : i32
    %c0_i32_0 = arith.constant 0 : i32
    %c0_i32_1 = arith.constant 0 : i32
    return %c0_i32, %c0_i32_0 : i32, i32
  }
  func.func @transform_2(%arg0: i32) -> (i32, i32) {
    %c0_i32 = arith.constant 0 : i32
    %c0_i32_0 = arith.constant 0 : i32
    %c0_i32_1 = arith.constant 0 : i32
    return %c0_i32, %c0_i32_0 : i32, i32
  }
  func.func @transform_3(%arg0: i32) -> (i32, i32) {
    %c0_i32 = arith.constant 0 : i32
    %c0_i32_0 = arith.constant 0 : i32
    %c0_i32_1 = arith.constant 0 : i32
    return %c0_i32, %c0_i32_0 : i32, i32
  }
  func.func @transform_4(%arg0: i32) -> (i32, i32) {
    %c0_i32 = arith.constant 0 : i32
    %c0_i32_0 = arith.constant 0 : i32
    %c0_i32_1 = arith.constant 0 : i32
    return %c0_i32, %c0_i32_0 : i32, i32
  }
  func.func @transform_5(%arg0: i32) -> (i32, i32) {
    %c0_i32 = arith.constant 0 : i32
    %c0_i32_0 = arith.constant 0 : i32
    %c0_i32_1 = arith.constant 0 : i32
    return %c0_i32, %c0_i32_0 : i32, i32
  }
  func.func @transform_6(%arg0: i32) -> (i32, i32) {
    %c0_i32 = arith.constant 0 : i32
    %c0_i32_0 = arith.constant 0 : i32
    %c0_i32_1 = arith.constant 0 : i32
    return %c0_i32, %c0_i32_0 : i32, i32
  }
  func.func @transform_7(%arg0: i32) -> (i32, i32, i32) {
    %c0_i32 = arith.constant 0 : i32
    %c0_i32_0 = arith.constant 0 : i32
    %c0_i32_1 = arith.constant 0 : i32
    return %arg0, %c0_i32, %c0_i32_0 : i32, i32, i32
  }
}

</mosaic_0001>

<llo_original>
// kernel: tpu_custom_call.1
$region0: #{tpu_custom_call.1}
  #allocation0 [shape = 'u32[]', space=smem, size = 0x4, offset = 0x4, fixed_abs, tag = 'smem constant byte address 0x4 - core index']
  #allocation1 [shape = 'u32[144,128]{1,0:T(1,128)}', space=vmem, size = 0x12000, scoped, tag = 'internal scratch']
  #allocation2 [shape = 'f32[1,1]{1,0:T(1,128)S(6)}', space=smem, size = 0x200, scoped, tag = 'scoped memory for tpu_custom_call.1']
  %s0 = inlined_call_operand.vmem [shape: f32[8,16], index: 0, kind: input, shape index: {}]
  %s1 = inlined_call_operand.vmem [shape: f32[16,32], index: 1, kind: input, shape index: {}]
  %s2 = inlined_call_operand.vmem [shape: f32[1,32], index: 2, kind: input, shape index: {}]
  %s3 = inlined_call_operand.vmem [shape: f32[32,16], index: 3, kind: input, shape index: {}]
  %s4 = inlined_call_operand.vmem [shape: f32[1,16], index: 4, kind: input, shape index: {}]
  %s5 = inlined_call_operand.vmem [shape: f32[1,16], index: 5, kind: input, shape index: {}]
  %s6 = inlined_call_operand.<no memory space> [shape: f32[1,1], index: 6, kind: input, shape index: {}]
  %s7 = inlined_call_operand.hbm [shape: f32[1,1,8], index: 7, kind: output, shape index: {}]
  %s8 = sld [smem:[#allocation0]]
  $region38: #{tpu_custom_call.1} parent=0
    _
  %s10 = ssub.s32 1, %s8
  %s11 = scalar_select 0, %s10, %s8
  %12 = sst [smem:[#allocation2]] %s6
  $region1: #{tpu_custom_call.1} parent=0
    #allocation3 [shape = 'u8[512]{0}', space=vmem, size = 0x400, scoped, tag = 'output window, operand 0, single buffered']
    #allocation4 [shape = 's32[1]{0}', space=sflag, size = 0x4, scoped, tag = 'scoped memory for tpu_custom_call.1']
    %13 = vsyncpa [#allocation4], 0
    // Predicated region
    $region2: #{tpu_custom_call.1} parent=1 // pred_check
      _
    $region3: #{tpu_custom_call.1} parent=1 // pred_check_branch
      %15 = sbr.rel (0) target = $region5
    $region4: #{tpu_custom_call.1} parent=1 // pred_region
      _
    $region5: #{tpu_custom_call.1} parent=1 // pred_fallthru
      _
    // Predicated region
    $region6: #{tpu_custom_call.1} parent=1 // pred_check
      _
    $region7: #{tpu_custom_call.1} parent=1 // pred_check_branch
      %17 = sbr.rel (0) target = $region9
    $region8: #{tpu_custom_call.1} parent=1 // pred_region
      _
    $region9: #{tpu_custom_call.1} parent=1 // pred_fallthru
      _
    // Predicated region
    $region10: #{tpu_custom_call.1} parent=1 // pred_check
      _
    $region11: #{tpu_custom_call.1} parent=1 // pred_check_branch
      %19 = sbr.rel (0) target = $region13
    $region12: #{tpu_custom_call.1} parent=1 // pred_region
      _
    $region13: #{tpu_custom_call.1} parent=1 // pred_fallthru
      _
    // Predicated region
    $region14: #{tpu_custom_call.1} parent=1 // pred_check
      _
    $region15: #{tpu_custom_call.1} parent=1 // pred_check_branch
      %21 = sbr.rel (0) target = $region17
    $region16: #{tpu_custom_call.1} parent=1 // pred_region
      _
    $region17: #{tpu_custom_call.1} parent=1 // pred_fallthru
      _
    // Predicated region
    $region18: #{tpu_custom_call.1} parent=1 // pred_check
      _
    $region19: #{tpu_custom_call.1} parent=1 // pred_check_branch
      %23 = sbr.rel (0) target = $region21
    $region20: #{tpu_custom_call.1} parent=1 // pred_region
      _
    $region21: #{tpu_custom_call.1} parent=1 // pred_fallthru
      _
    // Predicated region
    $region22: #{tpu_custom_call.1} parent=1 // pred_check
      _
    $region23: #{tpu_custom_call.1} parent=1 // pred_check_branch
      %25 = sbr.rel (0) target = $region25
    $region24: #{tpu_custom_call.1} parent=1 // pred_region
      _
    $region25: #{tpu_custom_call.1} parent=1 // pred_fallthru
      _
    // Predicated region
    $region26: #{tpu_custom_call.1} parent=1 // pred_check
      _
    $region27: #{tpu_custom_call.1} parent=1 // pred_check_branch
      %27 = sbr.rel (0) target = $region29
    $region28: #{tpu_custom_call.1} parent=1 // pred_region
      _
    $region29: #{tpu_custom_call.1} parent=1 // pred_fallthru
      _
    %v28 = vld [vmem:[%s0] sm:$0xff]
    %v29 = vld [vmem:[%s1] sm:$0xff]
    %v30 = vld [vmem:[%s1 + $0x8] sm:$0xff]
    %v31 = vld [vmem:[%s2] sm:$0x1]
    %v33 = vlaneseq
    %v34 = vshrl.u32 %v33, 7
    %v35 = vsub.s32 0, %v34
    %v36 = vrot.slane %v31, %v35
    %vm38 = vcmask 130048
    %v40 = vsel %vm38, %v28, 0
    %42 = vmatprep.subr.mxu0 0.0
    %43 = vmatpush1.msra.mxu0 %v29
    %44 = vmatprep.subr.mxu0 0.0
    %45 = vmatpush1.msra.mxu0 %v30
    %46 = vmatprep.subr.mxu0 0.0
    %47 = vmatpush1.msra.mxu0 0.0
    %48 = vmatprep.subr.mxu0 0.0
    %49 = vmatpush1.msra.mxu0 0.0
    %50 = vmatprep.subr.mxu0 0.0
    %51 = vmatpush1.msra.mxu0 0.0
    %52 = vmatprep.subr.mxu0 0.0
    %53 = vmatpush1.msra.mxu0 0.0
    %54 = vmatprep.subr.mxu0 0.0
    %55 = vmatpush1.msra.mxu0 0.0
    %56 = vmatprep.subr.mxu0 0.0
    %57 = vmatpush1.msra.mxu0 0.0
    %58 = vmatprep.subr.mxu0 0.0
    %59 = vmatpush1.msra.mxu0 0.0
    %60 = vmatprep.subr.mxu0 0.0
    %61 = vmatpush1.msra.mxu0 0.0
    %62 = vmatprep.subr.mxu0 0.0
    %63 = vmatpush1.msra.mxu0 0.0
    %64 = vmatprep.subr.mxu0 0.0
    %65 = vmatpush1.msra.mxu0 0.0
    %66 = vmatprep.subr.mxu0 0.0
    %67 = vmatpush1.msra.mxu0 0.0
    %68 = vmatprep.subr.mxu0 0.0
    %69 = vmatpush1.msra.mxu0 0.0
    %70 = vmatprep.subr.mxu0 0.0
    %71 = vmatpush1.msra.mxu0 0.0
    %72 = vmatprep.subr.mxu0 0.0
    %73 = vmatpush1.msra.mxu0 0.0
    %74 = vmatprep.subr.mxu0 0.0
    %75 = vmatpush1.msra.mxu0 0.0
    %76 = vmatprep.subr.mxu0 0.0
    %77 = vmatpush1.msra.mxu0 0.0
    %78 = vmatprep.subr.mxu0 0.0
    %79 = vmatpush1.msra.mxu0 0.0
    %80 = vmatprep.subr.mxu0 0.0
    %81 = vmatpush1.msra.mxu0 0.0
    %82 = vmatprep.subr.mxu0 0.0
    %83 = vmatpush1.msra.mxu0 0.0
    %84 = vmatprep.subr.mxu0 0.0
    %85 = vmatpush1.msra.mxu0 0.0
    %86 = vmatprep.subr.mxu0 0.0
    %87 = vmatpush1.msra.mxu0 0.0
    %88 = vmatprep.subr.mxu0 0.0
    %89 = vmatpush1.msra.mxu0 0.0
    %90 = vmatprep.subr.mxu0 0.0
    %91 = vmatpush1.msra.mxu0 0.0
    %92 = vmatprep.subr.mxu0 0.0
    %93 = vmatpush1.msra.mxu0 0.0
    %94 = vmatprep.subr.mxu0 0.0
    %95 = vmatpush1.msra.mxu0 0.0
    %96 = vmatprep.subr.mxu0 0.0
    %97 = vmatpush1.msra.mxu0 0.0
    %98 = vmatprep.subr.mxu0 0.0
    %99 = vmatpush1.msra.mxu0 0.0
    %100 = vmatprep.subr.mxu0 0.0
    %101 = vmatpush1.msra.mxu0 0.0
    %102 = vmatprep.subr.mxu0 0.0
    %103 = vmatpush1.msra.mxu0 0.0
    %104 = vmatprep.subr.mxu0 0.0
    %105 = vmatpush1.msra.mxu0 0.0
    %106 = vmatprep.mubr.f32.mxu0 0.0
    %107 = vmatmul.mubr.f32.gmra.mrb[0].mxu0 %v40
    %v108 = vpop.f32.mrb[0].mxu0
    %v109 = vadd.f32 %v36, %v108
    %v110 = vpop.f32.mrb[0].mxu0
    %111 = vdwg.mxu0
    %v112 = vmax.f32 %v109, 0.0
    %v113 = vld [vmem:[%s3] sm:$0xff]
    %v114 = vld [vmem:[%s3 + $0x8] sm:$0xff]
    %v115 = vld [vmem:[%s3 + $0x10] sm:$0xff]
    %v116 = vld [vmem:[%s3 + $0x18] sm:$0xff]
    %v117 = vld [vmem:[%s4] sm:$0x1]
    %v119 = vlaneseq
    %v120 = vshrl.u32 %v119, 7
    %v121 = vsub.s32 0, %v120
    %v122 = vrot.slane %v117, %v121
    %vm124 = vcmask 261120
    %v126 = vsel %vm124, %v112, 0
    %128 = vmatprep.subr.mxu0 0.0
    %129 = vmatpush1.msra.mxu0 %v113
    %130 = vmatprep.subr.mxu0 0.0
    %131 = vmatpush1.msra.mxu0 %v114
    %132 = vmatprep.subr.mxu0 0.0
    %133 = vmatpush1.msra.mxu0 %v115
    %134 = vmatprep.subr.mxu0 0.0
    %135 = vmatpush1.msra.mxu0 %v116
    %136 = vmatprep.subr.mxu0 0.0
    %137 = vmatpush1.msra.mxu0 0.0
    %138 = vmatprep.subr.mxu0 0.0
    %139 = vmatpush1.msra.mxu0 0.0
    %140 = vmatprep.subr.mxu0 0.0
    %141 = vmatpush1.msra.mxu0 0.0
    %142 = vmatprep.subr.mxu0 0.0
    %143 = vmatpush1.msra.mxu0 0.0
    %144 = vmatprep.subr.mxu0 0.0
    %145 = vmatpush1.msra.mxu0 0.0
    %146 = vmatprep.subr.mxu0 0.0
    %147 = vmatpush1.msra.mxu0 0.0
    %148 = vmatprep.subr.mxu0 0.0
    %149 = vmatpush1.msra.mxu0 0.0
    %150 = vmatprep.subr.mxu0 0.0
    %151 = vmatpush1.msra.mxu0 0.0
    %152 = vmatprep.subr.mxu0 0.0
    %153 = vmatpush1.msra.mxu0 0.0
    %154 = vmatprep.subr.mxu0 0.0
    %155 = vmatpush1.msra.mxu0 0.0
    %156 = vmatprep.subr.mxu0 0.0
    %157 = vmatpush1.msra.mxu0 0.0
    %158 = vmatprep.subr.mxu0 0.0
    %159 = vmatpush1.msra.mxu0 0.0
    %160 = vmatprep.subr.mxu0 0.0
    %161 = vmatpush1.msra.mxu0 0.0
    %162 = vmatprep.subr.mxu0 0.0
    %163 = vmatpush1.msra.mxu0 0.0
    %164 = vmatprep.subr.mxu0 0.0
    %165 = vmatpush1.msra.mxu0 0.0
    %166 = vmatprep.subr.mxu0 0.0
    %167 = vmatpush1.msra.mxu0 0.0
    %168 = vmatprep.subr.mxu0 0.0
    %169 = vmatpush1.msra.mxu0 0.0
    %170 = vmatprep.subr.mxu0 0.0
    %171 = vmatpush1.msra.mxu0 0.0
    %172 = vmatprep.subr.mxu0 0.0
    %173 = vmatpush1.msra.mxu0 0.0
    %174 = vmatprep.subr.mxu0 0.0
    %175 = vmatpush1.msra.mxu0 0.0
    %176 = vmatprep.subr.mxu0 0.0
    %177 = vmatpush1.msra.mxu0 0.0
    %178 = vmatprep.subr.mxu0 0.0
    %179 = vmatpush1.msra.mxu0 0.0
    %180 = vmatprep.subr.mxu0 0.0
    %181 = vmatpush1.msra.mxu0 0.0
    %182 = vmatprep.subr.mxu0 0.0
    %183 = vmatpush1.msra.mxu0 0.0
    %184 = vmatprep.subr.mxu0 0.0
    %185 = vmatpush1.msra.mxu0 0.0
    %186 = vmatprep.subr.mxu0 0.0
    %187 = vmatpush1.msra.mxu0 0.0
    %188 = vmatprep.subr.mxu0 0.0
    %189 = vmatpush1.msra.mxu0 0.0
    %190 = vmatprep.subr.mxu0 0.0
    %191 = vmatpush1.msra.mxu0 0.0
    %192 = vmatprep.mubr.f32.mxu0 0.0
    %193 = vmatmul.mubr.f32.gmra.mrb[0].mxu0 %v126
    %v194 = vpop.f32.mrb[0].mxu0
    %v195 = vadd.f32 %v122, %v194
    %v196 = vpop.f32.mrb[0].mxu0
    %197 = vdwg.mxu0
    %v198 = vmax.f32 %v195, 0.0
    %v199 = vld [vmem:[%s5] sm:$0x1]
    %s200 = sld [smem:[#allocation2]]
    %v201 = vstv %s200
    %v203 = vsel %vm38, %v199, 0
    %v206 = vsel %vm38, %v198, 0
    %208 = vmatprep.subr.mxu0 0.0
    %209 = vmatpush1.xpose.msra.mxu0 %v206
    %210 = vmatprep.subr.mxu0 0.0
    %211 = vmatpush1.xpose.msra.mxu0 0.0
    %212 = vmatprep.subr.mxu0 0.0
    %213 = vmatpush1.xpose.msra.mxu0 0.0
    %214 = vmatprep.subr.mxu0 0.0
    %215 = vmatpush1.xpose.msra.mxu0 0.0
    %216 = vmatprep.subr.mxu0 0.0
    %217 = vmatpush1.xpose.msra.mxu0 0.0
    %218 = vmatprep.subr.mxu0 0.0
    %219 = vmatpush1.xpose.msra.mxu0 0.0
    %220 = vmatprep.subr.mxu0 0.0
    %221 = vmatpush1.xpose.msra.mxu0 0.0
    %222 = vmatprep.subr.mxu0 0.0
    %223 = vmatpush1.xpose.msra.mxu0 0.0
    %224 = vmatprep.subr.mxu0 0.0
    %225 = vmatpush1.xpose.msra.mxu0 0.0
    %226 = vmatprep.subr.mxu0 0.0
    %227 = vmatpush1.xpose.msra.mxu0 0.0
    %228 = vmatprep.subr.mxu0 0.0
    %229 = vmatpush1.xpose.msra.mxu0 0.0
    %230 = vmatprep.subr.mxu0 0.0
    %231 = vmatpush1.xpose.msra.mxu0 0.0
    %232 = vmatprep.subr.mxu0 0.0
    %233 = vmatpush1.xpose.msra.mxu0 0.0
    %234 = vmatprep.subr.mxu0 0.0
    %235 = vmatpush1.xpose.msra.mxu0 0.0
    %236 = vmatprep.subr.mxu0 0.0
    %237 = vmatpush1.xpose.msra.mxu0 0.0
    %238 = vmatprep.subr.mxu0 0.0
    %239 = vmatpush1.xpose.msra.mxu0 0.0
    %240 = vmatprep.subr.mxu0 0.0
    %241 = vmatpush1.xpose.msra.mxu0 0.0
    %242 = vmatprep.subr.mxu0 0.0
    %243 = vmatpush1.xpose.msra.mxu0 0.0
    %244 = vmatprep.subr.mxu0 0.0
    %245 = vmatpush1.xpose.msra.mxu0 0.0
    %246 = vmatprep.subr.mxu0 0.0
    %247 = vmatpush1.xpose.msra.mxu0 0.0
    %248 = vmatprep.subr.mxu0 0.0
    %249 = vmatpush1.xpose.msra.mxu0 0.0
    %250 = vmatprep.subr.mxu0 0.0
    %251 = vmatpush1.xpose.msra.mxu0 0.0
    %252 = vmatprep.subr.mxu0 0.0
    %253 = vmatpush1.xpose.msra.mxu0 0.0
    %254 = vmatprep.subr.mxu0 0.0
    %255 = vmatpush1.xpose.msra.mxu0 0.0
    %256 = vmatprep.subr.mxu0 0.0
    %257 = vmatpush1.xpose.msra.mxu0 0.0
    %258 = vmatprep.subr.mxu0 0.0
    %259 = vmatpush1.xpose.msra.mxu0 0.0
    %260 = vmatprep.subr.mxu0 0.0
    %261 = vmatpush1.xpose.msra.mxu0 0.0
    %262 = vmatprep.subr.mxu0 0.0
    %263 = vmatpush1.xpose.msra.mxu0 0.0
    %264 = vmatprep.subr.mxu0 0.0
    %265 = vmatpush1.xpose.msra.mxu0 0.0
    %266 = vmatprep.subr.mxu0 0.0
    %267 = vmatpush1.xpose.msra.mxu0 0.0
    %268 = vmatprep.subr.mxu0 0.0
    %269 = vmatpush1.xpose.msra.mxu0 0.0
    %270 = vmatprep.subr.mxu0 0.0
    %271 = vmatpush1.xpose.msra.mxu0 0.0
    %272 = vmatprep.mubr.f32.mxu0 0.0
    %273 = vmatmul.mubr.f32.gmra.mrb[0].mxu0 %v203
    %v274 = vpop.f32.mrb[0].mxu0
    %v275 = vadd.f32 %v201, %v274
    %v276 = vpop.f32.mrb[0].mxu0
    %277 = vdwg.mxu0
    %vm278 = vcmask 57344
    %279 = vst.msk [vmem:[#allocation3] sm:$0x1] %vm278, %v275
    // Predicated region
    $region30: #{tpu_custom_call.1} parent=1 // pred_check
      _
    $region31: #{tpu_custom_call.1} parent=1 // pred_check_branch
      %281 = sbr.rel (0) target = $region33
    $region32: #{tpu_custom_call.1} parent=1 // pred_region
      %s283 = ssub.s32 16, 16
      %284 = vsyncadd [#allocation4], %s283
      %s286 = sshll.u32 [#allocation3], 4
      %s287 = int_to_ptr.vmem [resolvable:$true] %s286
      %289 = dma.vmem_to_hbm [thread:$0]  %s287, 16, %s7, [#allocation4]
    $region33: #{tpu_custom_call.1} parent=1 // pred_fallthru
      _
    // Predicated region
    $region34: #{tpu_custom_call.1} parent=1 // pred_check
      _
    $region35: #{tpu_custom_call.1} parent=1 // pred_check_branch
      %291 = sbr.rel (0) target = $region37
    $region36: #{tpu_custom_call.1} parent=1 // pred_region
      %292 = dma.done [#allocation4], 16
    $region37: #{tpu_custom_call.1} parent=1 // pred_fallthru
      _
    %293 = vsyncpa [#allocation4], 1

</llo_original>
